<compile_context>
chip_gen: v7x
topology: tpu7x:2x2x1
jax: 0.10.0
libtpu: 0.0.40
codegen_flags: <defaults>
</compile_context>

<pallas_src>
import functools

import jax
import jax.numpy as jnp
from jax.experimental import pallas as pl
from jax.experimental.pallas import tpu as pltpu


def _round_up(v, m):
    return ((v + m - 1) // m) * m


def _vmem_capacity_bytes():
    """Per-core VMEM capacity; conservative fallback = v7x's 64 MiB."""
    try:
        cap = getattr(pltpu.get_tpu_info(), "vmem_capacity_bytes", None)
        if cap:
            return int(cap)
    except Exception:
        pass
    return 64 * 1024 * 1024


def _select_tiles(batch, n_pad, f_pad, adj_item, m_item, vmem_budget):
    """Pick (TM, TK).  Prefer TK == n_pad (contiguous adj DMA, no reduction axis, feature
    slab fetched once per batch), then the largest TM whose double-buffered tiles fit."""

    def usage(tm, tk):
        return (2 * tm * tk * adj_item        # adj tile, double-buffered
                + 2 * tk * f_pad * m_item     # feature tile, double-buffered
                + 2 * tm * f_pad * 4)         # f32 output tile, double-buffered

    aligned = (4096, 2048, 1024, 512, 256, 128)
    tk_cands = sorted({n_pad} | {t for t in aligned if n_pad % t == 0}, reverse=True)
    tm_cands = sorted({n_pad} | {t for t in aligned if n_pad % t == 0}, reverse=True)
    if batch == 1:  # v7x has 2 TensorCores: keep >= 2 programs on the parallel axes
        split = [t for t in tm_cands if n_pad // t >= 2]
        if split:
            tm_cands = split

    for tk in tk_cands:
        for tm in tm_cands:
            if usage(tm, tk) <= vmem_budget:
                return tm, tk
    return tm_cands[-1], tk_cands[-1]


def _spmm_kernel(adj_ref, m_ref, o_ref, *, compute_dtype):
    # Full contraction in one step (TK == N_pad): o = adj_tile @ m
    a = adj_ref[...].astype(compute_dtype)   # in-kernel cast: VPU filler under the MXU
    o_ref[...] = jnp.dot(a, m_ref[...], preferred_element_type=jnp.float32)


def _spmm_reduce_kernel(adj_ref, m_ref, o_ref, *, compute_dtype):
    # Tiled contraction: accumulate directly into the f32 output block (VMEM-resident
    # across the innermost "arbitrary" reduction axis) — no scratch accumulator.
    k = pl.program_id(2)

    @pl.when(k == 0)
    def _():
        o_ref[...] = jnp.zeros_like(o_ref)

    a = adj_ref[...].astype(compute_dtype)
    o_ref[...] += jnp.dot(a, m_ref[...], preferred_element_type=jnp.float32)


def _adj_spmm(adj, m, *, compute_dtype, tm=None, tk=None):
    """out[b] = adj[b] @ m[b].  adj: (B, Np, Np) in its native dtype (cast per tile
    in-kernel), m: (B, Np, Fp) already in compute_dtype.  Returns f32 (B, Np, Fp)."""
    B, Np, _ = adj.shape
    Fp = m.shape[-1]
    adj_item = jnp.dtype(adj.dtype).itemsize
    m_item = jnp.dtype(m.dtype).itemsize

    vmem_cap = _vmem_capacity_bytes()
    budget = int(vmem_cap * 0.7)

    if tm is None or tk is None:
        tm_sel, tk_sel = _select_tiles(B, Np, Fp, adj_item, m_item, budget)
        tm = tm if tm is not None else tm_sel
        tk = tk if tk is not None else tk_sel
    assert Np % tm == 0 and Np % tk == 0, "tiles must divide the padded N"

    usage = 2 * tm * tk * adj_item + 2 * tk * Fp * m_item + 2 * tm * Fp * 4
    vmem_limit = int(min(vmem_cap, max(usage + (16 << 20), 32 << 20)))

    n_i = Np // tm
    n_k = Np // tk

    # Honest HBM traffic: adj once; the feature slab once per batch if TK == Np (its block
    # index is constant across row tiles), otherwise once per row tile; f32 output once.
    m_reads = 1 if n_k == 1 else n_i
    cost = pl.CostEstimate(
        flops=2 * B * Np * Np * Fp,
        transcendentals=0,
        bytes_accessed=(B * Np * Np * adj_item
                        + m_reads * B * Np * Fp * m_item
                        + B * Np * Fp * 4),
    )

    if n_k == 1:
        kernel = functools.partial(_spmm_kernel, compute_dtype=compute_dtype)
        grid = (B, n_i)
        in_specs = [
            pl.BlockSpec((None, tm, Np), lambda b, i: (b, i, 0)),
            pl.BlockSpec((None, Np, Fp), lambda b, i: (b, 0, 0)),
        ]
        out_specs = pl.BlockSpec((None, tm, Fp), lambda b, i: (b, i, 0))
        dims = ("parallel", "parallel")
    else:
        kernel = functools.partial(_spmm_reduce_kernel, compute_dtype=compute_dtype)
        grid = (B, n_i, n_k)
        in_specs = [
            pl.BlockSpec((None, tm, tk), lambda b, i, k: (b, i, k)),
            pl.BlockSpec((None, tk, Fp), lambda b, i, k: (b, k, 0)),
        ]
        out_specs = pl.BlockSpec((None, tm, Fp), lambda b, i, k: (b, i, 0))
        dims = ("parallel", "parallel", "arbitrary")

    return pl.pallas_call(
        kernel,
        out_shape=jax.ShapeDtypeStruct((B, Np, Fp), jnp.float32),
        grid_spec=pltpu.PrefetchScalarGridSpec(
            num_scalar_prefetch=0,
            grid=grid,
            in_specs=in_specs,
            out_specs=out_specs,
        ),
        compiler_params=pltpu.CompilerParams(
            dimension_semantics=dims,
            vmem_limit_bytes=vmem_limit,
        ),
        cost_estimate=cost,
    )(adj, m)


def graph_conv(x, adj, weight, *, compute_dtype=jnp.bfloat16, tm=None, tk=None):
    """x: (B, N, F_in), adj: (B, N, N), weight: (F_out, F_in) -> (B, N, F_out).
    compute_dtype=float32 is the exact-semantics path; bf16 (default) halves the
    feature-stream HBM traffic and keeps f32 accumulation."""
    B, N, F_in = x.shape
    F_out = weight.shape[0]
    out_dtype = x.dtype

    F_in_pad = _round_up(F_in, 128)
    F_out_pad = _round_up(F_out, 128)

    # Pad N to an (8,128)-aligned size instead of ever emitting a full-N fallback block.
    N_pad = _round_up(N, 128) if N >= 128 else _round_up(N, 8)
    pad_n = N_pad - N

    # Run the N^2 GEMM at the narrower feature width.
    project_first = F_out_pad <= F_in_pad

    if project_first:
        # h = x @ W.T (tiny GEMM, plain XLA — fuses pad + cast), then Pallas: adj @ h.
        wt = jnp.zeros((F_in, F_out_pad), weight.dtype).at[:, :F_out].set(weight.T)
        xp = jnp.pad(x, ((0, 0), (0, pad_n), (0, 0))) if pad_n else x
        m = jnp.einsum("bni,io->bno", xp, wt).astype(compute_dtype)
        adj_p = jnp.pad(adj, ((0, 0), (0, pad_n), (0, pad_n))) if pad_n else adj
        y = _adj_spmm(adj_p, m, compute_dtype=compute_dtype, tm=tm, tk=tk)
        out = y[:, :N, :F_out]
    else:
        # Re-associate: y = adj @ x_pad (narrow width) in Pallas, then y @ W.T in XLA.
        xp = jnp.pad(x, ((0, 0), (0, pad_n), (0, F_in_pad - F_in)))
        m = xp.astype(compute_dtype)
        adj_p = jnp.pad(adj, ((0, 0), (0, pad_n), (0, pad_n))) if pad_n else adj
        y = _adj_spmm(adj_p, m, compute_dtype=compute_dtype, tm=tm, tk=tk)
        out = jnp.einsum("bnf,of->bno", y[:, :N, :F_in], weight.astype(jnp.float32))

    return out.astype(out_dtype)


if __name__ == "__main__":
    key = jax.random.PRNGKey(0)
    k_x, k_adj, k_w, k_x2, k_adj2, k_w3 = jax.random.split(key, 6)

    def torch_ref(x, adj, w):
        # PyTorch forward: adj @ nn.Linear(x)  (bias=False)
        return jnp.einsum("bnm,bmf->bnf", adj, jnp.einsum("bni,oi->bno", x, w))

    # ---- case 1: module-default small image graph, both dtype modes ----
    B, N, F_in, F_out = 2, 16, 8, 32
    x = jax.random.normal(k_x, (B, N, F_in), dtype=jnp.float32)
    adj = jax.random.uniform(k_adj, (B, N, N), dtype=jnp.float32)
    bound = 1.0 / (F_in ** 0.5)
    w = jax.random.uniform(k_w, (F_out, F_in), jnp.float32, minval=-bound, maxval=bound)
    ref = torch_ref(x, adj, w)

    out_f32 = jax.block_until_ready(graph_conv(x, adj, w, compute_dtype=jnp.float32))
    assert out_f32.shape == (B, N, F_out)
    assert jnp.allclose(out_f32, ref, atol=1e-4, rtol=1e-4)

    out_bf16 = jax.block_until_ready(graph_conv(x, adj, w))
    assert out_bf16.shape == (B, N, F_out)
    assert jnp.allclose(out_bf16, ref, atol=5e-2, rtol=5e-2)

    # ---- case 2: non-divisible N, B=1, forced small tiles -> exercises N zero-padding
    #      and the tiled-reduction (accumulate-into-output) kernel path ----
    B2, N2 = 1, 200
    x2 = jax.random.normal(k_x2, (B2, N2, F_in), dtype=jnp.float32)
    adj2 = jax.random.uniform(k_adj2, (B2, N2, N2), dtype=jnp.float32)
    ref2 = torch_ref(x2, adj2, w)
    out2 = jax.block_until_ready(
        graph_conv(x2, adj2, w, compute_dtype=jnp.float32, tm=128, tk=128))
    assert out2.shape == (B2, N2, F_out)
    assert jnp.allclose(out2, ref2, atol=1e-3, rtol=1e-3)

    # ---- case 3: F_out_pad > F_in_pad -> re-associated (adj @ x) @ W.T path ----
    F_out3 = 256
    w3 = jax.random.uniform(k_w3, (F_out3, F_in), jnp.float32, minval=-bound, maxval=bound)
    ref3 = torch_ref(x, adj, w3)
    out3 = jax.block_until_ready(graph_conv(x, adj, w3, compute_dtype=jnp.float32))
    assert out3.shape == (B, N, F_out3)
    assert jnp.allclose(out3, ref3, atol=1e-4, rtol=1e-4)

    print("KERNEL_OK")
</pallas_src>

<mosaic_0001>
module attributes {stable_mosaic.version = 11 : i64} {
  func.func @_spmm_kernel(%arg0: i32, %arg1: i32, %arg2: memref<1x16x16xf32, #tpu.memory_space<vmem>>, %arg3: memref<1x16x128xf32, #tpu.memory_space<vmem>>, %arg4: memref<1x16x128xf32, #tpu.memory_space<vmem>>) attributes {dimension_semantics = [#tpu.dimension_semantics<parallel>, #tpu.dimension_semantics<parallel>], iteration_bounds = array<i64: 2, 1>, scalar_prefetch = 0 : i64, scratch_operands = 0 : i64, tpu.core_type = #tpu.core_type<tc>, window_params = [{transform_indices = @transform_0, window_bounds = array<i64: 1, 16, 16>}, {transform_indices = @transform_1, window_bounds = array<i64: 1, 16, 128>}, {transform_indices = @transform_2, window_bounds = array<i64: 1, 16, 128>}]} {
    %c0 = arith.constant 0 : index
    %c0_0 = arith.constant 0 : index
    %c0_1 = arith.constant 0 : index
    %0 = vector.load %arg2[%c0, %c0_0, %c0_1] : memref<1x16x16xf32, #tpu.memory_space<vmem>>, vector<1x16x16xf32>
    %1 = vector.shape_cast %0 : vector<1x16x16xf32> to vector<16x16xf32>
    %c0_2 = arith.constant 0 : index
    %c0_3 = arith.constant 0 : index
    %c0_4 = arith.constant 0 : index
    %2 = vector.load %arg3[%c0_2, %c0_3, %c0_4] : memref<1x16x128xf32, #tpu.memory_space<vmem>>, vector<1x16x128xf32>
    %3 = vector.shape_cast %2 : vector<1x16x128xf32> to vector<16x128xf32>
    %cst = arith.constant dense<0.000000e+00> : vector<16x128xf32>
    %4 = tpu.matmul %1, %3, %cst {dimension_numbers = #tpu.dot_dimension_numbers<[1], [0], [0], [1], [0, 0, 1, 1], [], []>} : vector<16x16xf32>, vector<16x128xf32>, vector<16x128xf32> -> vector<16x128xf32>
    %c0_5 = arith.constant 0 : index
    %c0_6 = arith.constant 0 : index
    %c0_7 = arith.constant 0 : index
    %5 = vector.load %arg4[%c0_5, %c0_6, %c0_7] : memref<1x16x128xf32, #tpu.memory_space<vmem>>, vector<1x16x128xf32>
    %6 = vector.shape_cast %5 : vector<1x16x128xf32> to vector<16x128xf32>
    %7 = vector.shape_cast %4 : vector<16x128xf32> to vector<1x16x128xf32>
    tpu.vector_store %arg4[%c0_5, %c0_6, %c0_7], %7 {strides = array<i32>} : memref<1x16x128xf32, #tpu.memory_space<vmem>>, vector<1x16x128xf32>,
    return
  }
  func.func @transform_0(%arg0: i32, %arg1: i32) -> (i32, i32, i32) {
    %c0_i32 = arith.constant 0 : i32
    %c0_i32_0 = arith.constant 0 : i32
    return %arg0, %arg1, %c0_i32 : i32, i32, i32
  }
  func.func @transform_1(%arg0: i32, %arg1: i32) -> (i32, i32, i32) {
    %c0_i32 = arith.constant 0 : i32
    %c0_i32_0 = arith.constant 0 : i32
    %c0_i32_1 = arith.constant 0 : i32
    return %arg0, %c0_i32, %c0_i32_0 : i32, i32, i32
  }
  func.func @transform_2(%arg0: i32, %arg1: i32) -> (i32, i32, i32) {
    %c0_i32 = arith.constant 0 : i32
    %c0_i32_0 = arith.constant 0 : i32
    return %arg0, %arg1, %c0_i32 : i32, i32, i32
  }
}

</mosaic_0001>

<llo_original>
// kernel: tpu_custom_call.1
$region0: #{tpu_custom_call.1}
  #allocation0 [shape = 'u32[]', space=smem, size = 0x4, offset = 0x4, fixed_abs, tag = 'smem constant byte address 0x4 - core index']
  #allocation1 [shape = 'u32[144,128]{1,0:T(1,128)}', space=vmem, size = 0x12000, scoped, tag = 'internal scratch']
  %s0 = inlined_call_operand.hbm [shape: f32[2,16,16], index: 0, kind: input, shape index: {}]
  %s1 = inlined_call_operand.hbm [shape: f32[2,16,128], index: 1, kind: input, shape index: {}]
  %s2 = inlined_call_operand.hbm [shape: f32[2,16,128], index: 2, kind: output, shape index: {}]
  %s3 = sld [smem:[#allocation0]]
  $region49: #{tpu_custom_call.1} parent=0
    _
  %s5 = ssub.s32 1, %s3
  %s6 = scalar_select 0, %s5, %s3
  $region1: #{tpu_custom_call.1} parent=0
    #allocation2 [shape = 'u8[16384]{0}', space=vmem, size = 0x4000, scoped, tag = 'input window, operand 0']
    #allocation3 [shape = 's32[2]{0}', space=sflag, size = 0x8, scoped, tag = 'scoped memory for tpu_custom_call.1']
    #allocation4 [shape = 's32[2]{0}', space=sflag, size = 0x8, scoped, tag = 'scoped memory for tpu_custom_call.1']
    #allocation5 [shape = 'u8[16384]{0}', space=vmem, size = 0x4000, scoped, tag = 'input window, operand 1']
    #allocation6 [shape = 's32[2]{0}', space=sflag, size = 0x8, scoped, tag = 'scoped memory for tpu_custom_call.1']
    #allocation7 [shape = 'u8[16384]{0}', space=vmem, size = 0x4000, scoped, tag = 'output window, operand 0']
    %7 = vsyncpa [#allocation3], 0
    %s8 = scalar_lea.sflag [#allocation3], 1
    %9 = vsyncpa %s8, 0
    %10 = vsyncpa [#allocation6], 0
    %s11 = scalar_lea.sflag [#allocation6], 1
    %12 = vsyncpa %s11, 0
    %13 = vsyncpa [#allocation4], 0
    %s14 = scalar_lea.sflag [#allocation4], 1
    %15 = vsyncpa %s14, 0
    loop: start=0, step=1, limit=4
    $region2: #{tpu_custom_call.1} parent=1 // loop_pre_header
      _
    $region3: #{tpu_custom_call.1} parent=1 // loop_header
      %s17 = sphi 0, %s21
      %p18 = scmp.ge.s32.totalorder %s17, 4
      %s24 = sphi 0, %s36
      %s25 = sphi 0, %s32
      %s26 = sphi 0, %s24
      %s27 = sphi 0, %s25
      %s28 = sphi 0, %s26
      %s29 = sphi 0, %s27
      %s41 = sphi 0, %s43
      %s44 = sphi 0, %s41
      %s45 = sphi 0, %s44
      %s61 = sphi 0, %s45
      %s67 = sphi 0, %s69
      %s70 = sphi 0, %s67
      %s71 = sphi 0, %s70
      %s87 = sphi 0, %s71
      %s95 = sphi 0, %s97
      %s98 = sphi 0, %s95
      %s99 = sphi 0, %s98
      %s115 = sphi 0, %s99
    $region4: #{tpu_custom_call.1} parent=1 // loop_header_branch
      %20 = sbr.rel (%p18) target = $region8
    $region5: #{tpu_custom_call.1} parent=1 // loop_body
      %s22 = ssub.s32 %s17, 1
      %s23 = ssub.s32 %s17, 2
      %s30 = sadd.s32 1, %s25
      %p31 = scmp.ge.s32.totalorder %s30, 1
      %s32 = scalar_select %p31, 0, %s30
      %s33 = sadd.s32 1, %s24
      %s34 = scalar_select %p31, %s33, %s24
      %p35 = scmp.ge.s32.totalorder %s34, 2
      %s36 = scalar_select %p35, 0, %s34
      %s37 = ssub.s32 %s24, %s36
      %s38 = ssub.s32 %s25, %s32
      %s39 = sor.u32 %s37, %s38
      %p40 = scmp.eq.s32.totalorder %s39, 0
      %s42 = sadd.s32 %s41, 1
      %s43 = scalar_select %p40, %s41, %s42
      %p46 = pneg %p40
      %p47 = scmp.eq.s32.totalorder %s17, 1
      %p48 = por %p46, %p47
      %p49 = scmp.ne.s32.totalorder %s41, %s44
      %p50 = scmp.eq.s32.totalorder %s17, 0
      %p51 = por %p49, %p50
      %p52 = scmp.ne.s32.totalorder %s41, %s44
      %p53 = scmp.eq.s32.totalorder %s22, 1
      %p54 = por %p52, %p53
      %p55 = scmp.ne.s32.totalorder %s44, %s45
      %p56 = scmp.eq.s32.totalorder %s22, 0
      %p57 = por %p55, %p56
      %p58 = scmp.ne.s32.totalorder %s44, %s45
      %p59 = scmp.eq.s32.totalorder %s23, 1
      %p60 = por %p58, %p59
      %p62 = scmp.ne.s32.totalorder %s45, %s61
      %p63 = scmp.eq.s32.totalorder %s23, 0
      %p64 = por %p62, %p63
      %s65 = ssub.s32 %s24, %s36
      %p66 = scmp.eq.s32.totalorder %s65, 0
      %s68 = sadd.s32 %s67, 1
      %s69 = scalar_select %p66, %s67, %s68
      %p72 = pneg %p66
      %p73 = scmp.eq.s32.totalorder %s17, 1
      %p74 = por %p72, %p73
      %p75 = scmp.ne.s32.totalorder %s67, %s70
      %p76 = scmp.eq.s32.totalorder %s17, 0
      %p77 = por %p75, %p76
      %p78 = scmp.ne.s32.totalorder %s67, %s70
      %p79 = scmp.eq.s32.totalorder %s22, 1
      %p80 = por %p78, %p79
      %p81 = scmp.ne.s32.totalorder %s70, %s71
      %p82 = scmp.eq.s32.totalorder %s22, 0
      %p83 = por %p81, %p82
      %p84 = scmp.ne.s32.totalorder %s70, %s71
      %p85 = scmp.eq.s32.totalorder %s23, 1
      %p86 = por %p84, %p85
      %p88 = scmp.ne.s32.totalorder %s71, %s87
      %p89 = scmp.eq.s32.totalorder %s23, 0
      %p90 = por %p88, %p89
      %s91 = ssub.s32 %s24, %s36
      %s92 = ssub.s32 %s25, %s32
      %s93 = sor.u32 %s91, %s92
      %p94 = scmp.eq.s32.totalorder %s93, 0
      %s96 = sadd.s32 %s95, 1
      %s97 = scalar_select %p94, %s95, %s96
      %p100 = pneg %p94
      %p101 = scmp.eq.s32.totalorder %s17, 1
      %p102 = por %p100, %p101
      %p103 = scmp.ne.s32.totalorder %s95, %s98
      %p104 = scmp.eq.s32.totalorder %s17, 0
      %p105 = por %p103, %p104
      %p106 = scmp.ne.s32.totalorder %s95, %s98
      %p107 = scmp.eq.s32.totalorder %s22, 1
      %p108 = por %p106, %p107
      %p109 = scmp.ne.s32.totalorder %s98, %s99
      %p110 = scmp.eq.s32.totalorder %s22, 0
      %p111 = por %p109, %p110
      %p112 = scmp.ne.s32.totalorder %s98, %s99
      %p113 = scmp.eq.s32.totalorder %s23, 1
      %p114 = por %p112, %p113
      %p116 = scmp.ne.s32.totalorder %s99, %s115
      %p117 = scmp.eq.s32.totalorder %s23, 0
      %p118 = por %p116, %p117
      %p119 = scmp.le.s32.totalorder 1, %s17
      %p120 = scmp.lt.s32.totalorder %s17, 3
      %p121 = pnand %p119, %p120
      %p122 = pneg %p121
      // Predicated region
      $region9: #{tpu_custom_call.1} parent=5 // pred_check
        _
      $region10: #{tpu_custom_call.1} parent=5 // pred_check_branch
        %124 = sbr.rel (%p121) target = $region12
      $region11: #{tpu_custom_call.1} parent=5 // pred_region
        %s125 = ssub.s32 %s17, 1
      $region12: #{tpu_custom_call.1} parent=5 // pred_fallthru
        _
      %p126 = scmp.lt.s32.totalorder %s17, 2
      // Predicated region
      $region13: #{tpu_custom_call.1} parent=5 // pred_check
        %p127 = pneg %p126
      $region14: #{tpu_custom_call.1} parent=5 // pred_check_branch
        %129 = sbr.rel (%p127) target = $region16
      $region15: #{tpu_custom_call.1} parent=5 // pred_region
        // Predicated region
        $region17: #{tpu_custom_call.1} parent=15 // pred_check
          %p130 = pneg %p51
        $region18: #{tpu_custom_call.1} parent=15 // pred_check_branch
          %132 = sbr.rel (%p130) target = $region20
        $region19: #{tpu_custom_call.1} parent=15 // pred_region
          %s133 = sand.u32 %s41, 1
          %s134 = scalar_lea.sflag [#allocation3], %s133
          %s135 = sand.u32 %s41, 1
          %s136 = smul.addr %s135, 16
          %s137 = scalar_lea.vmem [#allocation2], %s136
          %s138 = smul.u32 2, %s25
          %s140 = ssub.s32 256, 256
          %141 = vsyncadd %s134, %s140
          %s142 = smul.addr %s24, 2
          %s143 = sadd.s32 %s138, %s142
          %s144 = smul.addr %s143, 128
          %s145 = scalar_lea.hbm %s0, %s144
          %s146 = sshll.u32 %s137, 4
          %s147 = int_to_ptr.vmem [resolvable:$true] %s146
          %152 = dma.hbm_to_vmem [thread:$0]  %s145, 256, %s147, %s134, 128, 128, 8
        $region20: #{tpu_custom_call.1} parent=15 // pred_fallthru
          _
        // Predicated region
        $region21: #{tpu_custom_call.1} parent=15 // pred_check
          %p153 = pneg %p77
        $region22: #{tpu_custom_call.1} parent=15 // pred_check_branch
          %155 = sbr.rel (%p153) target = $region24
        $region23: #{tpu_custom_call.1} parent=15 // pred_region
          %s156 = sand.u32 %s67, 1
          %s157 = scalar_lea.sflag [#allocation6], %s156
          %s158 = sand.u32 %s67, 1
          %s159 = smul.addr %s158, 16
          %s160 = scalar_lea.vmem [#allocation5], %s159
          %s162 = ssub.s32 256, 256
          %163 = vsyncadd %s157, %s162
          %s164 = smul.addr %s24, 2
          %s165 = smul.addr %s164, 128
          %s166 = scalar_lea.hbm %s1, %s165
          %s167 = sshll.u32 %s160, 4
          %s168 = int_to_ptr.vmem [resolvable:$true] %s167
          %173 = dma.hbm_to_vmem [thread:$0]  %s166, 256, %s168, %s157, 128, 128, 8
        $region24: #{tpu_custom_call.1} parent=15 // pred_fallthru
          _
      $region16: #{tpu_custom_call.1} parent=5 // pred_fallthru
        _
      %p174 = scmp.le.s32.totalorder 1, %s17
      %p175 = scmp.lt.s32.totalorder %s17, 3
      %p176 = pnand %p174, %p175
      %p177 = pneg %p176
      // Predicated region
      $region25: #{tpu_custom_call.1} parent=5 // pred_check
        _
      $region26: #{tpu_custom_call.1} parent=5 // pred_check_branch
        %179 = sbr.rel (%p176) target = $region28
      $region27: #{tpu_custom_call.1} parent=5 // pred_region
        %s180 = ssub.s32 %s17, 1
        %s181 = sand.u32 %s44, 1
        %s182 = scalar_lea.sflag [#allocation3], %s181
        %s183 = sand.u32 %s44, 1
        %s184 = smul.addr %s183, 16
        %s185 = scalar_lea.vmem [#allocation2], %s184
        // Predicated region
        $region29: #{tpu_custom_call.1} parent=27 // pred_check
          %p186 = pneg %p57
        $region30: #{tpu_custom_call.1} parent=27 // pred_check_branch
          %188 = sbr.rel (%p186) target = $region32
        $region31: #{tpu_custom_call.1} parent=27 // pred_region
          %189 = dma.done %s182, 256
        $region32: #{tpu_custom_call.1} parent=27 // pred_fallthru
          _
        %s190 = sand.u32 %s70, 1
        %s191 = scalar_lea.sflag [#allocation6], %s190
        %s192 = sand.u32 %s70, 1
        %s193 = smul.addr %s192, 16
        %s194 = scalar_lea.vmem [#allocation5], %s193
        // Predicated region
        $region33: #{tpu_custom_call.1} parent=27 // pred_check
          %p195 = pneg %p83
        $region34: #{tpu_custom_call.1} parent=27 // pred_check_branch
          %197 = sbr.rel (%p195) target = $region36
        $region35: #{tpu_custom_call.1} parent=27 // pred_region
          %198 = dma.done %s191, 256
        $region36: #{tpu_custom_call.1} parent=27 // pred_fallthru
          _
        %s199 = sand.u32 %s44, 1
        %s200 = scalar_lea.sflag [#allocation3], %s199
        %s201 = sand.u32 %s44, 1
        %s202 = smul.addr %s201, 16
        %s203 = scalar_lea.vmem [#allocation2], %s202
        %p204 = pneg %p57
        %p205 = pneg %p54
        %s206 = sand.u32 %s70, 1
        %s207 = scalar_lea.sflag [#allocation6], %s206
        %s208 = sand.u32 %s70, 1
        %s209 = smul.addr %s208, 16
        %s210 = scalar_lea.vmem [#allocation5], %s209
        %p211 = pneg %p83
        %p212 = pneg %p80
        %p213 = pneg %p111
        %p214 = pneg %p108
        %s215 = sand.u32 %s98, 1
        %s216 = scalar_lea.sflag [#allocation4], %s215
        %s217 = sand.u32 %s98, 1
        %s218 = smul.addr %s217, 16
        %s219 = scalar_lea.vmem [#allocation7], %s218
        %s220 = smul.u32 2, %s27
        %s221 = smul.u32 2, %s27
        %v222 = vld [vmem:[%s185] sm:$0xff]
        %v223 = vld [vmem:[%s185 + $0x8] sm:$0xff]
        %v224 = vld [vmem:[%s194] sm:$0xff]
        %v225 = vld [vmem:[%s194 + $0x8] sm:$0xff]
        %vm226 = vcmask 130048
        %v228 = vsel %vm226, %v222, 0
        %v231 = vsel %vm226, %v223, 0
        %233 = vmatprep.subr.mxu0 0.0
        %234 = vmatpush1.msra.mxu0 %v224
        %235 = vmatprep.subr.mxu0 0.0
        %236 = vmatpush1.msra.mxu0 %v225
        %237 = vmatprep.subr.mxu0 0.0
        %238 = vmatpush1.msra.mxu0 0.0
        %239 = vmatprep.subr.mxu0 0.0
        %240 = vmatpush1.msra.mxu0 0.0
        %241 = vmatprep.subr.mxu0 0.0
        %242 = vmatpush1.msra.mxu0 0.0
        %243 = vmatprep.subr.mxu0 0.0
        %244 = vmatpush1.msra.mxu0 0.0
        %245 = vmatprep.subr.mxu0 0.0
        %246 = vmatpush1.msra.mxu0 0.0
        %247 = vmatprep.subr.mxu0 0.0
        %248 = vmatpush1.msra.mxu0 0.0
        %249 = vmatprep.subr.mxu0 0.0
        %250 = vmatpush1.msra.mxu0 0.0
        %251 = vmatprep.subr.mxu0 0.0
        %252 = vmatpush1.msra.mxu0 0.0
        %253 = vmatprep.subr.mxu0 0.0
        %254 = vmatpush1.msra.mxu0 0.0
        %255 = vmatprep.subr.mxu0 0.0
        %256 = vmatpush1.msra.mxu0 0.0
        %257 = vmatprep.subr.mxu0 0.0
        %258 = vmatpush1.msra.mxu0 0.0
        %259 = vmatprep.subr.mxu0 0.0
        %260 = vmatpush1.msra.mxu0 0.0
        %261 = vmatprep.subr.mxu0 0.0
        %262 = vmatpush1.msra.mxu0 0.0
        %263 = vmatprep.subr.mxu0 0.0
        %264 = vmatpush1.msra.mxu0 0.0
        %265 = vmatprep.subr.mxu0 0.0
        %266 = vmatpush1.msra.mxu0 0.0
        %267 = vmatprep.subr.mxu0 0.0
        %268 = vmatpush1.msra.mxu0 0.0
        %269 = vmatprep.subr.mxu0 0.0
        %270 = vmatpush1.msra.mxu0 0.0
        %271 = vmatprep.subr.mxu0 0.0
        %272 = vmatpush1.msra.mxu0 0.0
        %273 = vmatprep.subr.mxu0 0.0
        %274 = vmatpush1.msra.mxu0 0.0
        %275 = vmatprep.subr.mxu0 0.0
        %276 = vmatpush1.msra.mxu0 0.0
        %277 = vmatprep.subr.mxu0 0.0
        %278 = vmatpush1.msra.mxu0 0.0
        %279 = vmatprep.subr.mxu0 0.0
        %280 = vmatpush1.msra.mxu0 0.0
        %281 = vmatprep.subr.mxu0 0.0
        %282 = vmatpush1.msra.mxu0 0.0
        %283 = vmatprep.subr.mxu0 0.0
        %284 = vmatpush1.msra.mxu0 0.0
        %285 = vmatprep.subr.mxu0 0.0
        %286 = vmatpush1.msra.mxu0 0.0
        %287 = vmatprep.subr.mxu0 0.0
        %288 = vmatpush1.msra.mxu0 0.0
        %289 = vmatprep.subr.mxu0 0.0
        %290 = vmatpush1.msra.mxu0 0.0
        %291 = vmatprep.subr.mxu0 0.0
        %292 = vmatpush1.msra.mxu0 0.0
        %293 = vmatprep.subr.mxu0 0.0
        %294 = vmatpush1.msra.mxu0 0.0
        %295 = vmatprep.subr.mxu0 0.0
        %296 = vmatpush1.msra.mxu0 0.0
        %297 = vmatprep.mubr.f32.mxu0 0.0
        %298 = vmatmul.mubr.f32.gmra.mrb[0].mxu0 %v228
        %v299 = vpop.f32.mrb[0].mxu0
        %v300 = vadd.f32 0.0, %v299
        %v301 = vpop.f32.mrb[0].mxu0
        %302 = vmatprep.mubr.f32.mxu0 0.0
        %303 = vmatmul.mubr.f32.gmra.mrb[0].mxu0 %v231
        %v304 = vpop.f32.mrb[0].mxu0
        %v305 = vadd.f32 0.0, %v304
        %v306 = vpop.f32.mrb[0].mxu0
        %307 = vdwg.mxu0
        %308 = vst [vmem:[%s219] sm:$0xff] %v300
        %309 = vst [vmem:[%s219 + $0x8] sm:$0xff] %v305
        %s310 = sand.u32 %s98, 1
        %s311 = scalar_lea.sflag [#allocation4], %s310
        %s312 = sand.u32 %s98, 1
        %s313 = smul.addr %s312, 16
        %s314 = scalar_lea.vmem [#allocation7], %s313
        // Predicated region
        $region37: #{tpu_custom_call.1} parent=27 // pred_check
          %p315 = pneg %p108
        $region38: #{tpu_custom_call.1} parent=27 // pred_check_branch
          %317 = sbr.rel (%p315) target = $region40
        $region39: #{tpu_custom_call.1} parent=27 // pred_region
          %s318 = smul.u32 2, %s27
          %s320 = ssub.s32 256, 256
          %321 = vsyncadd %s311, %s320
          %s322 = smul.addr %s26, 2
          %s323 = sadd.s32 %s318, %s322
          %s324 = smul.addr %s323, 128
          %s325 = scalar_lea.hbm %s2, %s324
          %s326 = sshll.u32 %s314, 4
          %s327 = int_to_ptr.vmem [resolvable:$true] %s326
          %332 = dma.vmem_to_hbm [thread:$0]  %s327, 256, %s325, %s311, 128, 128, 8
        $region40: #{tpu_custom_call.1} parent=27 // pred_fallthru
          _
      $region28: #{tpu_custom_call.1} parent=5 // pred_fallthru
        _
      %p333 = scmp.le.s32.totalorder 2, %s17
      // Predicated region
      $region41: #{tpu_custom_call.1} parent=5 // pred_check
        %p334 = pneg %p333
      $region42: #{tpu_custom_call.1} parent=5 // pred_check_branch
        %336 = sbr.rel (%p334) target = $region44
      $region43: #{tpu_custom_call.1} parent=5 // pred_region
        %s337 = ssub.s32 %s17, 2
        // Predicated region
        $region45: #{tpu_custom_call.1} parent=43 // pred_check
          %p338 = pneg %p114
        $region46: #{tpu_custom_call.1} parent=43 // pred_check_branch
          %340 = sbr.rel (%p338) target = $region48
        $region47: #{tpu_custom_call.1} parent=43 // pred_region
          %s341 = sand.u32 %s99, 1
          %s342 = scalar_lea.sflag [#allocation4], %s341
          %s343 = sand.u32 %s99, 1
          %s344 = smul.addr %s343, 16
          %s345 = scalar_lea.vmem [#allocation7], %s344
          %346 = dma.done %s342, 256
        $region48: #{tpu_custom_call.1} parent=43 // pred_fallthru
          _
      $region44: #{tpu_custom_call.1} parent=5 // pred_fallthru
        _
    $region6: #{tpu_custom_call.1} parent=1 // loop_footer
      %s21 = sadd.s32 1, %s17
    $region7: #{tpu_custom_call.1} parent=1 // loop_footer_branch
      %16 = sbr.rel target = $region3
    $region8: #{tpu_custom_call.1} parent=1 // loop_exit
      _
    %347 = vsyncpa [#allocation3], 1
    %s348 = scalar_lea.sflag [#allocation3], 1
    %349 = vsyncpa %s348, 1
    %350 = vsyncpa [#allocation6], 1
    %s351 = scalar_lea.sflag [#allocation6], 1
    %352 = vsyncpa %s351, 1
    %353 = vsyncpa [#allocation4], 1
    %s354 = scalar_lea.sflag [#allocation4], 1
    %355 = vsyncpa %s354, 1

</llo_original>
